<compile_context>
chip_gen: v6e
topology: v6e:2x2x1
jax: 0.10.0
libtpu: 0.0.40
codegen_flags: <defaults>
</compile_context>

<pallas_src>
import jax
import jax.numpy as jnp
from jax.experimental import pallas as pl
from jax.experimental.pallas import tpu as pltpu

_LANES = 128


def _cdiv(a, b):
    return -(-a // b)


def _prod_running_kernel(x_ref, o_ref, acc_ref):
    """Left-to-right running product over the leading (W-block) axis.

    x_ref:   (w_block, r_block, 128) input tile (caller dtype)
    o_ref:   (r_block, 128)          output tile (caller dtype)
    acc_ref: (r_block, 128) f32 accumulator, resident across the W grid axis
    """
    # Running product of this W-block: only one f32 accumulator stays live, so
    # Mosaic fuses each load into its multiply (pure VPU, no tree temporaries).
    acc = x_ref[0].astype(jnp.float32)
    for w in range(1, x_ref.shape[0]):
        acc = acc * x_ref[w].astype(jnp.float32)

    k = pl.program_id(1)

    @pl.when(k == 0)
    def _():
        acc_ref[...] = acc

    @pl.when(k != 0)
    def _():
        acc_ref[...] = acc_ref[...] * acc

    @pl.when(k == pl.num_programs(1) - 1)
    def _():
        o_ref[...] = acc_ref[...].astype(o_ref.dtype)


def dconvdend_forward(
    x,
    *,
    max_rows_per_block=1024,
    input_block_budget_bytes=12 * 1024 * 1024,
    small_input_bytes=1 << 20,
    force_pallas=False,
):
    """Pallas equivalent of DConvDend.forward: product over dim 3 of NCHW input."""
    B, C, H, W = x.shape
    N = B * C * H

    # Integer inputs: preserve torch.prod's exact integer arithmetic (the
    # kernel accumulates in f32).  Small inputs: dispatch-dominated -> XLA
    # fusion is strictly faster there.
    if not jnp.issubdtype(x.dtype, jnp.floating):
        return jnp.prod(x, axis=3)
    if not force_pallas and x.size * jnp.dtype(x.dtype).itemsize < small_input_bytes:
        return jnp.prod(x, axis=3)

    itemsize = jnp.dtype(x.dtype).itemsize
    rows = _cdiv(N, _LANES)

    # ---- W- and dtype-aware tile sizing (generation-safe VMEM budget) ----
    strip = _LANES * itemsize                     # bytes of one (1, 1, 128) strip
    r_cap = input_block_budget_bytes // (W * strip)
    if r_cap >= min(rows, 8):
        # All of W fits in one block at a usable row-block size.
        w_block = W
        r_block = min(rows, max_rows_per_block, r_cap)
    else:
        # W too large for one block: tile the W (reduction) axis instead.
        r_block = min(rows, 8)
        w_block = max(1, input_block_budget_bytes // (r_block * strip))
    num_w_blocks = _cdiv(W, w_block)
    w_block = _cdiv(W, num_w_blocks)              # rebalance to minimize W padding

    if r_block < rows:
        r_block = max(8, (r_block // 8) * 8)      # (8,128) tiling constraint
    num_row_blocks = _cdiv(rows, r_block)
    if num_row_blocks > 1:
        # Rebalance to minimize row padding (stay a multiple of 8).
        r_block = _cdiv(_cdiv(rows, num_row_blocks), 8) * 8
        num_row_blocks = _cdiv(rows, r_block)

    w_padded = num_w_blocks * w_block
    rows_padded = num_row_blocks * r_block
    n_padded = rows_padded * _LANES

    # ---- Relayout: W leading, flattened B*C*H lane-dense; ONE pad call ----
    xt = jnp.transpose(x, (3, 0, 1, 2)).reshape(W, N)
    if w_padded != W or n_padded != N:
        # Pad with the multiplicative identity; padded lanes / rows / W slices
        # never mix with real data (no cross-lane ops) and are dropped below.
        xt = jnp.pad(xt, ((0, w_padded - W), (0, n_padded - N)), constant_values=1)
    xt = xt.reshape(w_padded, rows_padded, _LANES)

    out2 = pl.pallas_call(
        _prod_running_kernel,
        out_shape=jax.ShapeDtypeStruct((rows_padded, _LANES), x.dtype),
        grid=(num_row_blocks, num_w_blocks),      # reduction (W) axis last
        in_specs=[
            pl.BlockSpec((w_block, r_block, _LANES), lambda i, k: (k, i, 0)),
        ],
        out_specs=pl.BlockSpec((r_block, _LANES), lambda i, k: (i, 0)),
        scratch_shapes=[pltpu.VMEM((r_block, _LANES), jnp.float32)],
        compiler_params=pltpu.CompilerParams(
            # Row blocks are independent -> "parallel"; the W axis carries a
            # resident output/scratch accumulator -> "arbitrary".
            dimension_semantics=("parallel", "arbitrary"),
            vmem_limit_bytes=32 * 1024 * 1024,
        ),
    )(xt)

    return out2.reshape(-1)[:N].reshape(B, C, H)


if __name__ == "__main__":
    key = jax.random.PRNGKey(0)
    key_a, key_b = jax.random.split(key)

    # --- Test 1: toy NCHW shape, f32, forced through the Pallas path ---
    B, C, H, W = 2, 4, 16, 16
    x = 1.0 + 0.05 * jax.random.normal(key_a, (B, C, H, W), dtype=jnp.float32)
    out = jax.block_until_ready(dconvdend_forward(x, force_pallas=True))
    ref = jnp.prod(x, axis=3)
    assert out.shape == (B, C, H), out.shape
    assert out.dtype == x.dtype, out.dtype
    assert jnp.allclose(out, ref, rtol=1e-5, atol=1e-5)

    # Default (non-forced) small-input path falls back to jnp.prod.
    out_fb = jax.block_until_ready(dconvdend_forward(x))
    assert jnp.allclose(out_fb, ref, rtol=1e-5, atol=1e-5)

    # --- Test 2: exercise multi-block grid (row blocks + W blocks + padding)
    # at a still-small shape by shrinking the per-block VMEM budget. ---
    B2, C2, H2, W2 = 2, 4, 160, 11
    x2 = 1.0 + 0.05 * jax.random.normal(key_b, (B2, C2, H2, W2), dtype=jnp.float32)
    out2 = jax.block_until_ready(
        dconvdend_forward(x2, force_pallas=True, input_block_budget_bytes=8192)
    )
    ref2 = jnp.prod(x2, axis=3)
    assert out2.shape == (B2, C2, H2), out2.shape
    assert jnp.allclose(out2, ref2, rtol=1e-5, atol=1e-5)

    # --- Test 3: bf16 streamed dtype (f32 accumulation inside the kernel) ---
    x3 = x.astype(jnp.bfloat16)
    out3 = jax.block_until_ready(dconvdend_forward(x3, force_pallas=True))
    ref3 = jnp.prod(x3.astype(jnp.float32), axis=3).astype(jnp.bfloat16)
    assert out3.dtype == jnp.bfloat16
    assert jnp.allclose(out3.astype(jnp.float32), ref3.astype(jnp.float32),
                        rtol=2e-2, atol=2e-2)

    print("KERNEL_OK")
</pallas_src>

<mosaic_0001>
module attributes {stable_mosaic.version = 11 : i64} {
  func.func @_prod_running_kernel(%arg0: i32, %arg1: i32, %arg2: memref<16x1x128xf32, #tpu.memory_space<vmem>>, %arg3: memref<1x128xf32, #tpu.memory_space<vmem>>, %arg4: memref<1x128xf32, #tpu.memory_space<vmem>>) attributes {dimension_semantics = [#tpu.dimension_semantics<parallel>, #tpu.dimension_semantics<arbitrary>], iteration_bounds = array<i64: 1, 1>, scalar_prefetch = 0 : i64, scratch_operands = 1 : i64, tpu.core_type = #tpu.core_type<tc>, window_params = [{transform_indices = @transform_0, window_bounds = array<i64: 16, 1, 128>}, {transform_indices = @transform_1, window_bounds = array<i64: 1, 128>}]} {
    %c0 = arith.constant 0 : index
    %c0_0 = arith.constant 0 : index
    %c0_1 = arith.constant 0 : index
    %0 = vector.load %arg2[%c0, %c0_0, %c0_1] : memref<16x1x128xf32, #tpu.memory_space<vmem>>, vector<1x1x128xf32>
    %1 = vector.shape_cast %0 : vector<1x1x128xf32> to vector<1x128xf32>
    %c1 = arith.constant 1 : index
    %c0_2 = arith.constant 0 : index
    %c0_3 = arith.constant 0 : index
    %2 = vector.load %arg2[%c1, %c0_2, %c0_3] : memref<16x1x128xf32, #tpu.memory_space<vmem>>, vector<1x1x128xf32>
    %3 = vector.shape_cast %2 : vector<1x1x128xf32> to vector<1x128xf32>
    %4 = arith.mulf %1, %3 : vector<1x128xf32>
    %c2 = arith.constant 2 : index
    %c0_4 = arith.constant 0 : index
    %c0_5 = arith.constant 0 : index
    %5 = vector.load %arg2[%c2, %c0_4, %c0_5] : memref<16x1x128xf32, #tpu.memory_space<vmem>>, vector<1x1x128xf32>
    %6 = vector.shape_cast %5 : vector<1x1x128xf32> to vector<1x128xf32>
    %7 = arith.mulf %4, %6 : vector<1x128xf32>
    %c3 = arith.constant 3 : index
    %c0_6 = arith.constant 0 : index
    %c0_7 = arith.constant 0 : index
    %8 = vector.load %arg2[%c3, %c0_6, %c0_7] : memref<16x1x128xf32, #tpu.memory_space<vmem>>, vector<1x1x128xf32>
    %9 = vector.shape_cast %8 : vector<1x1x128xf32> to vector<1x128xf32>
    %10 = arith.mulf %7, %9 : vector<1x128xf32>
    %c4 = arith.constant 4 : index
    %c0_8 = arith.constant 0 : index
    %c0_9 = arith.constant 0 : index
    %11 = vector.load %arg2[%c4, %c0_8, %c0_9] : memref<16x1x128xf32, #tpu.memory_space<vmem>>, vector<1x1x128xf32>
    %12 = vector.shape_cast %11 : vector<1x1x128xf32> to vector<1x128xf32>
    %13 = arith.mulf %10, %12 : vector<1x128xf32>
    %c5 = arith.constant 5 : index
    %c0_10 = arith.constant 0 : index
    %c0_11 = arith.constant 0 : index
    %14 = vector.load %arg2[%c5, %c0_10, %c0_11] : memref<16x1x128xf32, #tpu.memory_space<vmem>>, vector<1x1x128xf32>
    %15 = vector.shape_cast %14 : vector<1x1x128xf32> to vector<1x128xf32>
    %16 = arith.mulf %13, %15 : vector<1x128xf32>
    %c6 = arith.constant 6 : index
    %c0_12 = arith.constant 0 : index
    %c0_13 = arith.constant 0 : index
    %17 = vector.load %arg2[%c6, %c0_12, %c0_13] : memref<16x1x128xf32, #tpu.memory_space<vmem>>, vector<1x1x128xf32>
    %18 = vector.shape_cast %17 : vector<1x1x128xf32> to vector<1x128xf32>
    %19 = arith.mulf %16, %18 : vector<1x128xf32>
    %c7 = arith.constant 7 : index
    %c0_14 = arith.constant 0 : index
    %c0_15 = arith.constant 0 : index
    %20 = vector.load %arg2[%c7, %c0_14, %c0_15] : memref<16x1x128xf32, #tpu.memory_space<vmem>>, vector<1x1x128xf32>
    %21 = vector.shape_cast %20 : vector<1x1x128xf32> to vector<1x128xf32>
    %22 = arith.mulf %19, %21 : vector<1x128xf32>
    %c8 = arith.constant 8 : index
    %c0_16 = arith.constant 0 : index
    %c0_17 = arith.constant 0 : index
    %23 = vector.load %arg2[%c8, %c0_16, %c0_17] : memref<16x1x128xf32, #tpu.memory_space<vmem>>, vector<1x1x128xf32>
    %24 = vector.shape_cast %23 : vector<1x1x128xf32> to vector<1x128xf32>
    %25 = arith.mulf %22, %24 : vector<1x128xf32>
    %c9 = arith.constant 9 : index
    %c0_18 = arith.constant 0 : index
    %c0_19 = arith.constant 0 : index
    %26 = vector.load %arg2[%c9, %c0_18, %c0_19] : memref<16x1x128xf32, #tpu.memory_space<vmem>>, vector<1x1x128xf32>
    %27 = vector.shape_cast %26 : vector<1x1x128xf32> to vector<1x128xf32>
    %28 = arith.mulf %25, %27 : vector<1x128xf32>
    %c10 = arith.constant 10 : index
    %c0_20 = arith.constant 0 : index
    %c0_21 = arith.constant 0 : index
    %29 = vector.load %arg2[%c10, %c0_20, %c0_21] : memref<16x1x128xf32, #tpu.memory_space<vmem>>, vector<1x1x128xf32>
    %30 = vector.shape_cast %29 : vector<1x1x128xf32> to vector<1x128xf32>
    %31 = arith.mulf %28, %30 : vector<1x128xf32>
    %c11 = arith.constant 11 : index
    %c0_22 = arith.constant 0 : index
    %c0_23 = arith.constant 0 : index
    %32 = vector.load %arg2[%c11, %c0_22, %c0_23] : memref<16x1x128xf32, #tpu.memory_space<vmem>>, vector<1x1x128xf32>
    %33 = vector.shape_cast %32 : vector<1x1x128xf32> to vector<1x128xf32>
    %34 = arith.mulf %31, %33 : vector<1x128xf32>
    %c12 = arith.constant 12 : index
    %c0_24 = arith.constant 0 : index
    %c0_25 = arith.constant 0 : index
    %35 = vector.load %arg2[%c12, %c0_24, %c0_25] : memref<16x1x128xf32, #tpu.memory_space<vmem>>, vector<1x1x128xf32>
    %36 = vector.shape_cast %35 : vector<1x1x128xf32> to vector<1x128xf32>
    %37 = arith.mulf %34, %36 : vector<1x128xf32>
    %c13 = arith.constant 13 : index
    %c0_26 = arith.constant 0 : index
    %c0_27 = arith.constant 0 : index
    %38 = vector.load %arg2[%c13, %c0_26, %c0_27] : memref<16x1x128xf32, #tpu.memory_space<vmem>>, vector<1x1x128xf32>
    %39 = vector.shape_cast %38 : vector<1x1x128xf32> to vector<1x128xf32>
    %40 = arith.mulf %37, %39 : vector<1x128xf32>
    %c14 = arith.constant 14 : index
    %c0_28 = arith.constant 0 : index
    %c0_29 = arith.constant 0 : index
    %41 = vector.load %arg2[%c14, %c0_28, %c0_29] : memref<16x1x128xf32, #tpu.memory_space<vmem>>, vector<1x1x128xf32>
    %42 = vector.shape_cast %41 : vector<1x1x128xf32> to vector<1x128xf32>
    %43 = arith.mulf %40, %42 : vector<1x128xf32>
    %c15 = arith.constant 15 : index
    %c0_30 = arith.constant 0 : index
    %c0_31 = arith.constant 0 : index
    %44 = vector.load %arg2[%c15, %c0_30, %c0_31] : memref<16x1x128xf32, #tpu.memory_space<vmem>>, vector<1x1x128xf32>
    %45 = vector.shape_cast %44 : vector<1x1x128xf32> to vector<1x128xf32>
    %46 = arith.mulf %43, %45 : vector<1x128xf32>
    %c0_i32 = arith.constant 0 : i32
    %47 = arith.cmpi eq, %arg1, %c0_i32 : i32
    %48 = arith.extui %47 : i1 to i32
    %c0_i32_32 = arith.constant 0 : i32
    %49 = arith.cmpi ne, %48, %c0_i32_32 : i32
    scf.if %49 {
      %c0_37 = arith.constant 0 : index
      %c0_38 = arith.constant 0 : index
      %56 = vector.load %arg4[%c0_37, %c0_38] : memref<1x128xf32, #tpu.memory_space<vmem>>, vector<1x128xf32>
      tpu.vector_store %arg4[%c0_37, %c0_38], %46 {strides = array<i32>} : memref<1x128xf32, #tpu.memory_space<vmem>>, vector<1x128xf32>,
    } else {
    }
    %c0_i32_33 = arith.constant 0 : i32
    %50 = arith.cmpi ne, %arg1, %c0_i32_33 : i32
    %51 = arith.extui %50 : i1 to i32
    %c0_i32_34 = arith.constant 0 : i32
    %52 = arith.cmpi ne, %51, %c0_i32_34 : i32
    scf.if %52 {
      %c0_37 = arith.constant 0 : index
      %c0_38 = arith.constant 0 : index
      %56 = vector.load %arg4[%c0_37, %c0_38] : memref<1x128xf32, #tpu.memory_space<vmem>>, vector<1x128xf32>
      %57 = arith.mulf %56, %46 : vector<1x128xf32>
      %c0_39 = arith.constant 0 : index
      %c0_40 = arith.constant 0 : index
      %58 = vector.load %arg4[%c0_39, %c0_40] : memref<1x128xf32, #tpu.memory_space<vmem>>, vector<1x128xf32>
      tpu.vector_store %arg4[%c0_39, %c0_40], %57 {strides = array<i32>} : memref<1x128xf32, #tpu.memory_space<vmem>>, vector<1x128xf32>,
    } else {
    }
    %c0_i32_35 = arith.constant 0 : i32
    %53 = arith.cmpi eq, %arg1, %c0_i32_35 : i32
    %54 = arith.extui %53 : i1 to i32
    %c0_i32_36 = arith.constant 0 : i32
    %55 = arith.cmpi ne, %54, %c0_i32_36 : i32
    scf.if %55 {
      %c0_37 = arith.constant 0 : index
      %c0_38 = arith.constant 0 : index
      %56 = vector.load %arg4[%c0_37, %c0_38] : memref<1x128xf32, #tpu.memory_space<vmem>>, vector<1x128xf32>
      %c0_39 = arith.constant 0 : index
      %c0_40 = arith.constant 0 : index
      %57 = vector.load %arg3[%c0_39, %c0_40] : memref<1x128xf32, #tpu.memory_space<vmem>>, vector<1x128xf32>
      tpu.vector_store %arg3[%c0_39, %c0_40], %56 {strides = array<i32>} : memref<1x128xf32, #tpu.memory_space<vmem>>, vector<1x128xf32>,
    } else {
    }
    return
  }
  func.func @transform_0(%arg0: i32, %arg1: i32) -> (i32, i32, i32) {
    %c0_i32 = arith.constant 0 : i32
    %c0_i32_0 = arith.constant 0 : i32
    return %arg1, %arg0, %c0_i32 : i32, i32, i32
  }
  func.func @transform_1(%arg0: i32, %arg1: i32) -> (i32, i32) {
    %c0_i32 = arith.constant 0 : i32
    %c0_i32_0 = arith.constant 0 : i32
    return %arg0, %c0_i32 : i32, i32
  }
}

</mosaic_0001>

<llo_original>
// kernel: tpu_custom_call.1
$region0: #{tpu_custom_call.1}
  #allocation0 [shape = 'u32[]', space=smem, size = 0x4, offset = 0x4, fixed_abs, tag = 'smem constant byte address 0x4 - core index']
  #allocation1 [shape = 'u32[144,128]{1,0:T(1,128)}', space=vmem, size = 0x12000, scoped, tag = 'internal scratch']
  #allocation2 [shape = 'f32[1,128]{1,0:T(1,128)}', space=vmem, size = 0x200, scoped, tag = 'scratch operand']
  %s0 = inlined_call_operand.hbm [shape: f32[16,1,128], index: 0, kind: input, shape index: {}]
  %s1 = inlined_call_operand.hbm [shape: f32[1,128], index: 1, kind: output, shape index: {}]
  %s2 = sld [smem:[#allocation0]]
  $region30: #{tpu_custom_call.1} parent=0
    _
  %s4 = ssub.s32 1, %s2
  %s5 = scalar_select 0, %s4, %s2
  $region1: #{tpu_custom_call.1} parent=0
    #allocation3 [shape = 'u8[8192]{0}', space=vmem, size = 0x2000, scoped, tag = 'input window, operand 0, single buffered']
    #allocation4 [shape = 's32[1]{0}', space=sflag, size = 0x4, scoped, tag = 'scoped memory for tpu_custom_call.1']
    #allocation5 [shape = 's32[1]{0}', space=sflag, size = 0x4, scoped, tag = 'scoped memory for tpu_custom_call.1']
    #allocation6 [shape = 'u8[512]{0}', space=vmem, size = 0x400, scoped, tag = 'output window, operand 0, single buffered']
    %6 = vsyncpa [#allocation4], 0
    %7 = vsyncpa [#allocation5], 0
    // Predicated region
    $region2: #{tpu_custom_call.1} parent=1 // pred_check
      _
    $region3: #{tpu_custom_call.1} parent=1 // pred_check_branch
      %9 = sbr.rel (0) target = $region5
    $region4: #{tpu_custom_call.1} parent=1 // pred_region
      %s11 = ssub.s32 256, 256
      %12 = vsyncadd [#allocation4], %s11
      %s13 = sshll.u32 [#allocation3], 4
      %s14 = int_to_ptr.vmem [resolvable:$true] %s13
      %19 = dma.hbm_to_vmem [thread:$0]  %s0, 256, %s14, [#allocation4], 16, 16, 1
    $region5: #{tpu_custom_call.1} parent=1 // pred_fallthru
      _
    // Predicated region
    $region6: #{tpu_custom_call.1} parent=1 // pred_check
      _
    $region7: #{tpu_custom_call.1} parent=1 // pred_check_branch
      %21 = sbr.rel (0) target = $region9
    $region8: #{tpu_custom_call.1} parent=1 // pred_region
      %22 = dma.done [#allocation4], 256
    $region9: #{tpu_custom_call.1} parent=1 // pred_fallthru
      _
    %v23 = vld [vmem:[#allocation3] sm:$0x1]
    %s24 = scalar_lea.vmem [#allocation3], 1
    %v25 = vld [vmem:[%s24] sm:$0x1]
    %v26 = vmul.f32 %v23, %v25
    %s27 = scalar_lea.vmem [#allocation3], 2
    %v28 = vld [vmem:[%s27] sm:$0x1]
    %v29 = vmul.f32 %v26, %v28
    %s30 = scalar_lea.vmem [#allocation3], 3
    %v31 = vld [vmem:[%s30] sm:$0x1]
    %v32 = vmul.f32 %v29, %v31
    %s33 = scalar_lea.vmem [#allocation3], 4
    %v34 = vld [vmem:[%s33] sm:$0x1]
    %v35 = vmul.f32 %v32, %v34
    %s36 = scalar_lea.vmem [#allocation3], 5
    %v37 = vld [vmem:[%s36] sm:$0x1]
    %v38 = vmul.f32 %v35, %v37
    %s39 = scalar_lea.vmem [#allocation3], 6
    %v40 = vld [vmem:[%s39] sm:$0x1]
    %v41 = vmul.f32 %v38, %v40
    %s42 = scalar_lea.vmem [#allocation3], 7
    %v43 = vld [vmem:[%s42] sm:$0x1]
    %v44 = vmul.f32 %v41, %v43
    %s45 = scalar_lea.vmem [#allocation3], 8
    %v46 = vld [vmem:[%s45] sm:$0x1]
    %v47 = vmul.f32 %v44, %v46
    %s48 = scalar_lea.vmem [#allocation3], 9
    %v49 = vld [vmem:[%s48] sm:$0x1]
    %v50 = vmul.f32 %v47, %v49
    %s51 = scalar_lea.vmem [#allocation3], 10
    %v52 = vld [vmem:[%s51] sm:$0x1]
    %v53 = vmul.f32 %v50, %v52
    %s54 = scalar_lea.vmem [#allocation3], 11
    %v55 = vld [vmem:[%s54] sm:$0x1]
    %v56 = vmul.f32 %v53, %v55
    %s57 = scalar_lea.vmem [#allocation3], 12
    %v58 = vld [vmem:[%s57] sm:$0x1]
    %v59 = vmul.f32 %v56, %v58
    %s60 = scalar_lea.vmem [#allocation3], 13
    %v61 = vld [vmem:[%s60] sm:$0x1]
    %v62 = vmul.f32 %v59, %v61
    %s63 = scalar_lea.vmem [#allocation3], 14
    %v64 = vld [vmem:[%s63] sm:$0x1]
    %v65 = vmul.f32 %v62, %v64
    %s66 = scalar_lea.vmem [#allocation3], 15
    %v67 = vld [vmem:[%s66] sm:$0x1]
    %v68 = vmul.f32 %v65, %v67
    %p69 = scmp.eq.s32.totalorder 0, 0
    // Predicated region
    $region10: #{tpu_custom_call.1} parent=1 // pred_check
      %p70 = pneg %p69
    $region11: #{tpu_custom_call.1} parent=1 // pred_check_branch
      %72 = sbr.rel (%p70) target = $region13
    $region12: #{tpu_custom_call.1} parent=1 // pred_region
      %73 = vst [vmem:[#allocation2] sm:$0x1] %v68
    $region13: #{tpu_custom_call.1} parent=1 // pred_fallthru
      _
    %p74 = scmp.ne.s32.totalorder 0, 0
    // Predicated region
    $region14: #{tpu_custom_call.1} parent=1 // pred_check
      %p75 = pneg %p74
    $region15: #{tpu_custom_call.1} parent=1 // pred_check_branch
      %77 = sbr.rel (%p75) target = $region17
    $region16: #{tpu_custom_call.1} parent=1 // pred_region
      %v78 = vld [vmem:[#allocation2] sm:$0x1]
      %v79 = vmul.f32 %v78, %v68
      %80 = vst [vmem:[#allocation2] sm:$0x1] %v79
    $region17: #{tpu_custom_call.1} parent=1 // pred_fallthru
      _
    // Predicated region
    $region18: #{tpu_custom_call.1} parent=1 // pred_check
      %p81 = pneg %p69
    $region19: #{tpu_custom_call.1} parent=1 // pred_check_branch
      %83 = sbr.rel (%p81) target = $region21
    $region20: #{tpu_custom_call.1} parent=1 // pred_region
      %v84 = vld [vmem:[#allocation2] sm:$0x1]
      %85 = vst [vmem:[#allocation6] sm:$0x1] %v84
    $region21: #{tpu_custom_call.1} parent=1 // pred_fallthru
      _
    // Predicated region
    $region22: #{tpu_custom_call.1} parent=1 // pred_check
      _
    $region23: #{tpu_custom_call.1} parent=1 // pred_check_branch
      %87 = sbr.rel (0) target = $region25
    $region24: #{tpu_custom_call.1} parent=1 // pred_region
      %s89 = ssub.s32 16, 16
      %90 = vsyncadd [#allocation5], %s89
      %s92 = sshll.u32 [#allocation6], 4
      %s93 = int_to_ptr.vmem [resolvable:$true] %s92
      %95 = dma.vmem_to_hbm [thread:$0]  %s93, 16, %s1, [#allocation5]
    $region25: #{tpu_custom_call.1} parent=1 // pred_fallthru
      _
    // Predicated region
    $region26: #{tpu_custom_call.1} parent=1 // pred_check
      _
    $region27: #{tpu_custom_call.1} parent=1 // pred_check_branch
      %97 = sbr.rel (0) target = $region29
    $region28: #{tpu_custom_call.1} parent=1 // pred_region
      %98 = dma.done [#allocation5], 16
    $region29: #{tpu_custom_call.1} parent=1 // pred_fallthru
      _
    %99 = vsyncpa [#allocation4], 1
    %100 = vsyncpa [#allocation5], 1

</llo_original>
